<compile_context>
chip_gen: v7x
topology: tpu7x:2x2x1
jax: 0.10.0
libtpu: 0.0.40
codegen_flags: <defaults>
</compile_context>

<pallas_src>
import functools

import jax
import jax.numpy as jnp
from jax.experimental import pallas as pl
from jax.experimental.pallas import tpu as pltpu

MARGIN = 1.0
EPS = 1e-6       # torch F.pairwise_distance default eps (added to the elementwise diff)
LANE = 128       # TPU lane width


def _round_up(x, m):
    return ((x + m - 1) // m) * m


def _contrastive_kernel(o1_ref, o2_ref, wsim_ref, wdis_ref, out_ref, *, margin, inv_b):
    """One batch tile: o1/o2 are (D, TB), weight rows are (1, TB), out is (1, 1) SMEM."""
    i = pl.program_id(0)

    @pl.when(i == 0)
    def _init():
        out_ref[0, 0] = 0.0

    # torch.pairwise_distance adds eps to the elementwise difference (intentional).
    diff = o1_ref[...].astype(jnp.float32) - o2_ref[...].astype(jnp.float32) + EPS
    d2 = jnp.sum(diff * diff, axis=0, keepdims=True)          # (1, TB) squared distance
    d = jnp.sqrt(d2)                                           # only the hinge branch needs d
    hinge = jnp.maximum(margin - d, 0.0)
    # w_sim = (1-label)*valid_mask, w_dis = label*valid_mask; padded lanes weigh 0, so the
    # result is exact despite batch padding.  Similar-pair term reuses d2 directly.
    loss = wsim_ref[...] * d2 + wdis_ref[...] * (hinge * hinge)  # (1, TB)
    out_ref[0, 0] += jnp.sum(loss)

    @pl.when(i == pl.num_programs(0) - 1)
    def _finalize():
        out_ref[0, 0] = out_ref[0, 0] * inv_b                  # mean over the true batch size


def contrastive_loss(output1, output2, label, margin=MARGIN):
    """output1, output2: (B, D) float; label: (B, 1) or (B,). Returns scalar f32 loss."""
    B, D = output1.shape

    # Batch tile on the lane axis: multiple of 128, capped at 1024 so
    # 2 inputs x 2 pipeline buffers x (D*TB*4 B) stays well under scoped VMEM everywhere.
    TB = min(1024, max(LANE, _round_up(B, LANE)))
    Bp = _round_up(B, TB)

    # Wrapper-side layout plumbing: batch on lanes, feature dim on sublanes.
    o1_t = jnp.pad(output1.astype(jnp.float32), ((0, Bp - B), (0, 0))).T   # (D, Bp)
    o2_t = jnp.pad(output2.astype(jnp.float32), ((0, Bp - B), (0, 0))).T   # (D, Bp)

    lab = jnp.pad(label.reshape(-1).astype(jnp.float32), (0, Bp - B))
    mask = jnp.pad(jnp.ones((B,), jnp.float32), (0, Bp - B))
    w_sim = ((1.0 - lab) * mask).reshape(1, Bp)                # lane-dense weight rows
    w_dis = (lab * mask).reshape(1, Bp)

    kernel = functools.partial(_contrastive_kernel, margin=float(margin), inv_b=1.0 / B)

    out = pl.pallas_call(
        kernel,
        out_shape=jax.ShapeDtypeStruct((1, 1), jnp.float32),
        grid=(Bp // TB,),
        in_specs=[
            pl.BlockSpec((D, TB), lambda i: (0, i)),
            pl.BlockSpec((D, TB), lambda i: (0, i)),
            pl.BlockSpec((1, TB), lambda i: (0, i)),
            pl.BlockSpec((1, TB), lambda i: (0, i)),
        ],
        out_specs=pl.BlockSpec(memory_space=pltpu.MemorySpace.SMEM),
        compiler_params=pltpu.CompilerParams(
            dimension_semantics=("arbitrary",),   # sequential accumulation into the scalar
        ),
    )(o1_t, o2_t, w_sim, w_dis)
    return out[0, 0]


def _reference(output1, output2, label):
    diff = output1 - output2 + EPS
    d = jnp.sqrt(jnp.sum(diff * diff, axis=-1, keepdims=True))
    hinge = jnp.maximum(MARGIN - d, 0.0)
    return jnp.mean((1.0 - label) * d**2 + label * hinge**2)


if __name__ == "__main__":
    key = jax.random.PRNGKey(0)
    k1, k2, k3 = jax.random.split(key, 3)
    B, D = 8, 32  # small shapes: batch=8, hidden=32
    output1 = jax.random.normal(k1, (B, D), dtype=jnp.float32)
    output2 = jax.random.normal(k2, (B, D), dtype=jnp.float32)
    label = jax.random.bernoulli(k3, 0.5, (B, 1)).astype(jnp.float32)

    loss = contrastive_loss(output1, output2, label)
    jax.block_until_ready(loss)

    ref = _reference(output1, output2, label)
    assert jnp.allclose(loss, ref, rtol=1e-5, atol=1e-5), (loss, ref)
    print("KERNEL_OK")
</pallas_src>

<mosaic_0001>
module attributes {stable_mosaic.version = 11 : i64} {
  func.func @_contrastive_kernel(%arg0: i32, %arg1: memref<32x128xf32, #tpu.memory_space<vmem>>, %arg2: memref<32x128xf32, #tpu.memory_space<vmem>>, %arg3: memref<1x128xf32, #tpu.memory_space<vmem>>, %arg4: memref<1x128xf32, #tpu.memory_space<vmem>>, %arg5: memref<1x1xf32, #tpu.memory_space<smem>>) attributes {dimension_semantics = [#tpu.dimension_semantics<arbitrary>], iteration_bounds = array<i64: 1>, scalar_prefetch = 0 : i64, scratch_operands = 0 : i64, tpu.core_type = #tpu.core_type<tc>, window_params = [{transform_indices = @transform_0, window_bounds = array<i64: 32, 128>}, {transform_indices = @transform_1, window_bounds = array<i64: 32, 128>}, {transform_indices = @transform_2, window_bounds = array<i64: 1, 128>}, {transform_indices = @transform_3, window_bounds = array<i64: 1, 128>}, {transform_indices = @transform_4, window_bounds = array<i64: 1, 1>}]} {
    %c0_i32 = arith.constant 0 : i32
    %0 = arith.cmpi eq, %arg0, %c0_i32 : i32
    %1 = arith.extui %0 : i1 to i32
    %c0_i32_0 = arith.constant 0 : i32
    %2 = arith.cmpi ne, %1, %c0_i32_0 : i32
    scf.if %2 {
      %cst_18 = arith.constant 0.000000e+00 : f32
      %c0_19 = arith.constant 0 : index
      %c0_20 = arith.constant 0 : index
      %32 = memref.load %arg5[%c0_19, %c0_20] : memref<1x1xf32, #tpu.memory_space<smem>>
      memref.store %cst_18, %arg5[%c0_19, %c0_20] : memref<1x1xf32, #tpu.memory_space<smem>>
    } else {
    }
    %c0 = arith.constant 0 : index
    %c0_1 = arith.constant 0 : index
    %3 = vector.load %arg1[%c0, %c0_1] : memref<32x128xf32, #tpu.memory_space<vmem>>, vector<32x128xf32>
    %c0_2 = arith.constant 0 : index
    %c0_3 = arith.constant 0 : index
    %4 = vector.load %arg2[%c0_2, %c0_3] : memref<32x128xf32, #tpu.memory_space<vmem>>, vector<32x128xf32>
    %5 = arith.subf %3, %4 : vector<32x128xf32>
    %cst = arith.constant 9.99999997E-7 : f32
    %6 = vector.broadcast %cst : f32 to vector<32x128xf32>
    %7 = arith.addf %5, %6 : vector<32x128xf32>
    %8 = arith.mulf %7, %7 : vector<32x128xf32>
    %cst_4 = arith.constant dense<0.000000e+00> : vector<128xf32>
    %9 = vector.multi_reduction <add>, %8, %cst_4 [0] : vector<32x128xf32> to vector<128xf32>
    %10 = vector.shape_cast %9 : vector<128xf32> to vector<1x128xf32>
    %11 = math.sqrt %10 : vector<1x128xf32>
    %cst_5 = arith.constant 1.000000e+00 : f32
    %12 = vector.broadcast %cst_5 : f32 to vector<1x128xf32>
    %13 = arith.subf %12, %11 : vector<1x128xf32>
    %cst_6 = arith.constant 0.000000e+00 : f32
    %14 = vector.broadcast %cst_6 : f32 to vector<1x128xf32>
    %15 = arith.maximumf %13, %14 : vector<1x128xf32>
    %c0_7 = arith.constant 0 : index
    %c0_8 = arith.constant 0 : index
    %16 = vector.load %arg3[%c0_7, %c0_8] : memref<1x128xf32, #tpu.memory_space<vmem>>, vector<1x128xf32>
    %17 = arith.mulf %16, %10 : vector<1x128xf32>
    %c0_9 = arith.constant 0 : index
    %c0_10 = arith.constant 0 : index
    %18 = vector.load %arg4[%c0_9, %c0_10] : memref<1x128xf32, #tpu.memory_space<vmem>>, vector<1x128xf32>
    %19 = arith.mulf %15, %15 : vector<1x128xf32>
    %20 = arith.mulf %18, %19 : vector<1x128xf32>
    %21 = arith.addf %17, %20 : vector<1x128xf32>
    %c0_11 = arith.constant 0 : index
    %c0_12 = arith.constant 0 : index
    %22 = memref.load %arg5[%c0_11, %c0_12] : memref<1x1xf32, #tpu.memory_space<smem>>
    %23 = vector.shape_cast %21 : vector<1x128xf32> to vector<1x1x128xf32>
    %cst_13 = arith.constant dense<0.000000e+00> : vector<1xf32>
    %24 = vector.multi_reduction <add>, %23, %cst_13 [1, 2] : vector<1x1x128xf32> to vector<1xf32>
    %25 = vector.shape_cast %24 : vector<1xf32> to vector<1x1x1xf32>
    %26 = vector.extract %25[0, 0, 0] : f32 from vector<1x1x1xf32>
    %27 = arith.addf %22, %26 : f32
    %c0_14 = arith.constant 0 : index
    %c0_15 = arith.constant 0 : index
    %28 = memref.load %arg5[%c0_14, %c0_15] : memref<1x1xf32, #tpu.memory_space<smem>>
    memref.store %27, %arg5[%c0_14, %c0_15] : memref<1x1xf32, #tpu.memory_space<smem>>
    %c0_i32_16 = arith.constant 0 : i32
    %29 = arith.cmpi eq, %arg0, %c0_i32_16 : i32
    %30 = arith.extui %29 : i1 to i32
    %c0_i32_17 = arith.constant 0 : i32
    %31 = arith.cmpi ne, %30, %c0_i32_17 : i32
    scf.if %31 {
      %c0_18 = arith.constant 0 : index
      %c0_19 = arith.constant 0 : index
      %32 = memref.load %arg5[%c0_18, %c0_19] : memref<1x1xf32, #tpu.memory_space<smem>>
      %cst_20 = arith.constant 1.250000e-01 : f32
      %33 = arith.mulf %32, %cst_20 : f32
      %c0_21 = arith.constant 0 : index
      %c0_22 = arith.constant 0 : index
      %34 = memref.load %arg5[%c0_21, %c0_22] : memref<1x1xf32, #tpu.memory_space<smem>>
      memref.store %33, %arg5[%c0_21, %c0_22] : memref<1x1xf32, #tpu.memory_space<smem>>
    } else {
    }
    return
  }
  func.func @transform_0(%arg0: i32) -> (i32, i32) {
    %c0_i32 = arith.constant 0 : i32
    %c0_i32_0 = arith.constant 0 : i32
    return %c0_i32, %arg0 : i32, i32
  }
  func.func @transform_1(%arg0: i32) -> (i32, i32) {
    %c0_i32 = arith.constant 0 : i32
    %c0_i32_0 = arith.constant 0 : i32
    return %c0_i32, %arg0 : i32, i32
  }
  func.func @transform_2(%arg0: i32) -> (i32, i32) {
    %c0_i32 = arith.constant 0 : i32
    %c0_i32_0 = arith.constant 0 : i32
    return %c0_i32, %arg0 : i32, i32
  }
  func.func @transform_3(%arg0: i32) -> (i32, i32) {
    %c0_i32 = arith.constant 0 : i32
    %c0_i32_0 = arith.constant 0 : i32
    return %c0_i32, %arg0 : i32, i32
  }
  func.func @transform_4(%arg0: i32) -> (i32, i32) {
    %c0_i32 = arith.constant 0 : i32
    %c0_i32_0 = arith.constant 0 : i32
    %c0_i32_1 = arith.constant 0 : i32
    return %c0_i32, %c0_i32_0 : i32, i32
  }
}

</mosaic_0001>

<llo_original>
// kernel: tpu_custom_call.1
$region0: #{tpu_custom_call.1}
  #allocation0 [shape = 'u32[]', space=smem, size = 0x4, offset = 0x4, fixed_abs, tag = 'smem constant byte address 0x4 - core index']
  #allocation1 [shape = 'u32[144,128]{1,0:T(1,128)}', space=vmem, size = 0x12000, scoped, tag = 'internal scratch']
  %s0 = inlined_call_operand.hbm [shape: f32[32,128], index: 0, kind: input, shape index: {}]
  %s1 = inlined_call_operand.hbm [shape: f32[32,128], index: 1, kind: input, shape index: {}]
  %s2 = inlined_call_operand.vmem [shape: f32[1,128], index: 2, kind: input, shape index: {}]
  %s3 = inlined_call_operand.vmem [shape: f32[1,128], index: 3, kind: input, shape index: {}]
  %s4 = inlined_call_operand.hbm [shape: f32[1,1], index: 4, kind: output, shape index: {}]
  %s5 = sld [smem:[#allocation0]]
  $region42: #{tpu_custom_call.1} parent=0
    _
  %s7 = ssub.s32 1, %s5
  %s8 = scalar_select 0, %s7, %s5
  $region1: #{tpu_custom_call.1} parent=0
    #allocation2 [shape = 'u8[16384]{0}', space=vmem, size = 0x4000, scoped, tag = 'input window, operand 0, single buffered']
    #allocation3 [shape = 's32[1]{0}', space=sflag, size = 0x4, scoped, tag = 'scoped memory for tpu_custom_call.1']
    #allocation4 [shape = 's32[1]{0}', space=sflag, size = 0x4, scoped, tag = 'scoped memory for tpu_custom_call.1']
    #allocation5 [shape = 'u8[16384]{0}', space=vmem, size = 0x4000, scoped, tag = 'input window, operand 1, single buffered']
    #allocation6 [shape = 's32[1]{0}', space=sflag, size = 0x4, scoped, tag = 'scoped memory for tpu_custom_call.1']
    #allocation7 [shape = 'u8[512]{0}', space=smem, size = 0x200, scoped, tag = 'output window, operand 0, single buffered']
    %9 = vsyncpa [#allocation3], 0
    %10 = vsyncpa [#allocation6], 0
    %11 = vsyncpa [#allocation4], 0
    // Predicated region
    $region2: #{tpu_custom_call.1} parent=1 // pred_check
      _
    $region3: #{tpu_custom_call.1} parent=1 // pred_check_branch
      %13 = sbr.rel (0) target = $region5
    $region4: #{tpu_custom_call.1} parent=1 // pred_region
      %s15 = ssub.s32 512, 512
      %16 = vsyncadd [#allocation3], %s15
      %s17 = sshll.u32 [#allocation2], 4
      %s18 = int_to_ptr.vmem [resolvable:$true] %s17
      %23 = dma.hbm_to_vmem [thread:$0]  %s0, 512, %s18, [#allocation3], 128, 128, 8
    $region5: #{tpu_custom_call.1} parent=1 // pred_fallthru
      _
    // Predicated region
    $region6: #{tpu_custom_call.1} parent=1 // pred_check
      _
    $region7: #{tpu_custom_call.1} parent=1 // pred_check_branch
      %25 = sbr.rel (0) target = $region9
    $region8: #{tpu_custom_call.1} parent=1 // pred_region
      %s27 = ssub.s32 512, 512
      %28 = vsyncadd [#allocation6], %s27
      %s29 = sshll.u32 [#allocation5], 4
      %s30 = int_to_ptr.vmem [resolvable:$true] %s29
      %35 = dma.hbm_to_vmem [thread:$0]  %s1, 512, %s30, [#allocation6], 128, 128, 8
    $region9: #{tpu_custom_call.1} parent=1 // pred_fallthru
      _
    // Predicated region
    $region10: #{tpu_custom_call.1} parent=1 // pred_check
      _
    $region11: #{tpu_custom_call.1} parent=1 // pred_check_branch
      %37 = sbr.rel (0) target = $region13
    $region12: #{tpu_custom_call.1} parent=1 // pred_region
      _
    $region13: #{tpu_custom_call.1} parent=1 // pred_fallthru
      _
    // Predicated region
    $region14: #{tpu_custom_call.1} parent=1 // pred_check
      _
    $region15: #{tpu_custom_call.1} parent=1 // pred_check_branch
      %39 = sbr.rel (0) target = $region17
    $region16: #{tpu_custom_call.1} parent=1 // pred_region
      _
    $region17: #{tpu_custom_call.1} parent=1 // pred_fallthru
      _
    // Predicated region
    $region18: #{tpu_custom_call.1} parent=1 // pred_check
      _
    $region19: #{tpu_custom_call.1} parent=1 // pred_check_branch
      %41 = sbr.rel (0) target = $region21
    $region20: #{tpu_custom_call.1} parent=1 // pred_region
      %42 = dma.done [#allocation3], 512
    $region21: #{tpu_custom_call.1} parent=1 // pred_fallthru
      _
    // Predicated region
    $region22: #{tpu_custom_call.1} parent=1 // pred_check
      _
    $region23: #{tpu_custom_call.1} parent=1 // pred_check_branch
      %44 = sbr.rel (0) target = $region25
    $region24: #{tpu_custom_call.1} parent=1 // pred_region
      %45 = dma.done [#allocation6], 512
    $region25: #{tpu_custom_call.1} parent=1 // pred_fallthru
      _
    %p46 = scmp.eq.s32.totalorder 0, 0
    // Predicated region
    $region26: #{tpu_custom_call.1} parent=1 // pred_check
      %p47 = pneg %p46
    $region27: #{tpu_custom_call.1} parent=1 // pred_check_branch
      %49 = sbr.rel (%p47) target = $region29
    $region28: #{tpu_custom_call.1} parent=1 // pred_region
      %s50 = scalar_lea.smem [#allocation7], 0
      %51 = sst [smem:[%s50]] 0.0
    $region29: #{tpu_custom_call.1} parent=1 // pred_fallthru
      _
    %v52 = vld [vmem:[#allocation2] sm:$0xff]
    %v53 = vld [vmem:[#allocation2 + $0x8] sm:$0xff]
    %v54 = vld [vmem:[#allocation2 + $0x10] sm:$0xff]
    %v55 = vld [vmem:[#allocation2 + $0x18] sm:$0xff]
    %v56 = vld [vmem:[#allocation5] sm:$0xff]
    %v57 = vld [vmem:[#allocation5 + $0x8] sm:$0xff]
    %v58 = vld [vmem:[#allocation5 + $0x10] sm:$0xff]
    %v59 = vld [vmem:[#allocation5 + $0x18] sm:$0xff]
    %v60 = vsub.f32 %v52, %v56
    %v61 = vsub.f32 %v53, %v57
    %v62 = vsub.f32 %v54, %v58
    %v63 = vsub.f32 %v55, %v59
    %v64 = vadd.f32 %v60, 1e-06
    %v65 = vadd.f32 %v61, 1e-06
    %v66 = vadd.f32 %v62, 1e-06
    %v67 = vadd.f32 %v63, 1e-06
    %v68 = vmul.f32 %v64, %v64
    %v69 = vmul.f32 %v65, %v65
    %v70 = vmul.f32 %v66, %v66
    %v71 = vmul.f32 %v67, %v67
    %v72 = vadd.f32 %v68, %v69
    %v73 = vadd.f32 %v72, %v70
    %v74 = vadd.f32 %v73, %v71
    %v75 = vrot.slane %v74, 4
    %v76 = vadd.f32 %v74, %v75
    %v77 = vrot.slane %v76, 2
    %v78 = vadd.f32 %v76, %v77
    %v79 = vrot.slane %v78, 1
    %v80 = vadd.f32 %v78, %v79
    %v81 = vrsqrt.pop %v80
    %v82 = vmul.f32 %v80, %v81
    %vm83 = vcmp.eq.f32.partialorder %v80, inf
    %v84 = vsel %vm83, %v80, %v82
    %vm85 = vcmp.eq.f32.partialorder %v80, 0.0
    %v86 = vand.u32 %v80, 2147483648
    %v87 = vsel %vm85, %v86, %v84
    %v88 = vsub.f32 1.0, %v87
    %v89 = vmax.f32 %v88, 0.0
    %v90 = vld [vmem:[%s2] sm:$0x1]
    %v91 = vmul.f32 %v90, %v80
    %v92 = vld [vmem:[%s3] sm:$0x1]
    %v93 = vmul.f32 %v89, %v89
    %v94 = vmul.f32 %v92, %v93
    %v95 = vadd.f32 %v91, %v94
    %s96 = sld [smem:[#allocation7]]
    %vm97 = vcmask 1040384
    %v98 = vsel %vm97, %v95, 0.0
    %99 = vadd.xlane.f32.xlu0 %v98
    %v100 = vpop.xlane.xlu0 %99
    %v101 = vrot.slane %v100, 4
    %v102 = vadd.f32 %v100, %v101
    %v103 = vrot.slane %v102, 2
    %v104 = vadd.f32 %v102, %v103
    %v105 = vrot.slane %v104, 1
    %v106 = vadd.f32 %v104, %v105
    %s107 = vtos %v106
    %s108 = sadd.f32 %s96, %s107
    %s109 = scalar_lea.smem [#allocation7], 0
    %110 = sst [smem:[%s109]] %s108
    // Predicated region
    $region30: #{tpu_custom_call.1} parent=1 // pred_check
      %p111 = pneg %p46
    $region31: #{tpu_custom_call.1} parent=1 // pred_check_branch
      %113 = sbr.rel (%p111) target = $region33
    $region32: #{tpu_custom_call.1} parent=1 // pred_region
      %s114 = sld [smem:[#allocation7]]
      %s115 = smul.f32 %s114, 0.125
      %116 = sst [smem:[%s109]] %s115
    $region33: #{tpu_custom_call.1} parent=1 // pred_fallthru
      _
    // Predicated region
    $region34: #{tpu_custom_call.1} parent=1 // pred_check
      _
    $region35: #{tpu_custom_call.1} parent=1 // pred_check_branch
      %118 = sbr.rel (0) target = $region37
    $region36: #{tpu_custom_call.1} parent=1 // pred_region
      %s120 = ssub.s32 16, 16
      %121 = vsyncadd [#allocation4], %s120
      %124 = dma.smem_to_hbm [#allocation7], 16, %s4, [#allocation4]
    $region37: #{tpu_custom_call.1} parent=1 // pred_fallthru
      _
    // Predicated region
    $region38: #{tpu_custom_call.1} parent=1 // pred_check
      _
    $region39: #{tpu_custom_call.1} parent=1 // pred_check_branch
      %126 = sbr.rel (0) target = $region41
    $region40: #{tpu_custom_call.1} parent=1 // pred_region
      %127 = dma.done [#allocation4], 16
    $region41: #{tpu_custom_call.1} parent=1 // pred_fallthru
      _
    %128 = sfence
    %129 = vsyncpa [#allocation3], 1
    %130 = vsyncpa [#allocation6], 1
    %131 = vsyncpa [#allocation4], 1

</llo_original>
